<compile_context>
chip_gen: v5e
topology: v5e:2x2
jax: 0.10.0
libtpu: 0.0.40
codegen_flags: <defaults>
</compile_context>

<pallas_src>
import jax
import jax.numpy as jnp
from jax.experimental import pallas as pl
from jax.experimental.pallas import tpu as pltpu


def _round_up(x: int, m: int) -> int:
    return ((x + m - 1) // m) * m


def classifier_kernel(x_ref, w_ref, b_ref, o_ref):
    # x_ref: [TILE_N, E] (bf16), w_ref: [E, C_pad] (bf16),
    # b_ref: [1, C_pad] (f32),   o_ref: [TILE_N, C_pad]
    acc = jnp.dot(x_ref[...], w_ref[...], preferred_element_type=jnp.float32)
    o_ref[...] = (acc + b_ref[...]).astype(o_ref.dtype)


def classifier_forward(x, w, b, *, tile_n: int = 1024,
                       compute_dtype=jnp.bfloat16):
    """Dropout(eval, identity) -> Linear.

    x: [..., E] float32; w: [E, C] (pre-transposed from torch's [C, E]); b: [C].
    Returns [..., C] in x.dtype.
    """
    orig_shape = x.shape
    E = orig_shape[-1]
    C = w.shape[1]
    out_dtype = x.dtype

    x2d = x.reshape(-1, E)
    N = x2d.shape[0]

    # Lane-dense output: pad class dim to a multiple of 128.
    C_pad = _round_up(max(C, 128), 128)

    # Row tiling: TILE_N sized for v7x's 64 MiB VMEM (bf16 x tile + f32 out
    # tile double-buffered stays well under the scoped limit at 1024 rows).
    n_pad8 = _round_up(N, 8)
    tn = min(tile_n, n_pad8)
    N_pad = _round_up(n_pad8, tn)

    x_p = x2d if N_pad == N else jnp.pad(x2d, ((0, N_pad - N), (0, 0)))
    w_p = jnp.pad(w, ((0, 0), (0, C_pad - C)))
    b_p = jnp.pad(b, (0, C_pad - C)).reshape(1, C_pad)

    # bf16 inputs (HBM-bound op); bias stays f32 for the f32 accumulate path.
    x_p = x_p.astype(compute_dtype)
    w_p = w_p.astype(compute_dtype)
    b_p = b_p.astype(jnp.float32)

    grid = (N_pad // tn,)

    out = pl.pallas_call(
        classifier_kernel,
        out_shape=jax.ShapeDtypeStruct((N_pad, C_pad), out_dtype),
        grid_spec=pl.GridSpec(
            grid=grid,
            in_specs=[
                pl.BlockSpec((tn, E), lambda i: (i, 0)),      # x tiles over rows
                pl.BlockSpec((E, C_pad), lambda i: (0, 0)),   # W VMEM-resident
                pl.BlockSpec((1, C_pad), lambda i: (0, 0)),   # bias VMEM-resident
            ],
            out_specs=pl.BlockSpec((tn, C_pad), lambda i: (i, 0)),
        ),
        compiler_params=pltpu.CompilerParams(
            dimension_semantics=("parallel",),   # rows are independent
            vmem_limit_bytes=64 << 20,
        ),
    )(x_p, w_p, b_p)

    out = out[:N, :C]
    return out.reshape(orig_shape[:-1] + (C,))


if __name__ == "__main__":
    # cfg-implied small shapes: EMBEDDING_SIZE=32, CLASS_NUM=8, batch=2, seq=8
    EMBEDDING_SIZE = 32
    NUM_CLASSES = 8
    BATCH, SEQ = 2, 8

    key = jax.random.PRNGKey(0)
    k_x, k_w, k_b = jax.random.split(key, 3)

    # Input embeddings: [B, T, E]
    x = jax.random.normal(k_x, (BATCH, SEQ, EMBEDDING_SIZE), dtype=jnp.float32)

    # PyTorch-style Linear init uniform(-1/sqrt(E), 1/sqrt(E)), stored as [E, C].
    bound = 1.0 / (EMBEDDING_SIZE ** 0.5)
    w = jax.random.uniform(k_w, (EMBEDDING_SIZE, NUM_CLASSES),
                           minval=-bound, maxval=bound, dtype=jnp.float32)
    b = jax.random.uniform(k_b, (NUM_CLASSES,),
                           minval=-bound, maxval=bound, dtype=jnp.float32)

    # Dropout is identity in eval mode; no-op before the Linear.
    out = classifier_forward(x, w, b)
    jax.block_until_ready(out)

    assert out.shape == (BATCH, SEQ, NUM_CLASSES)

    # Exact reference for the bf16-input / f32-accumulate path used in-kernel.
    ref_bf16 = (jnp.dot(x.reshape(-1, EMBEDDING_SIZE).astype(jnp.bfloat16),
                        w.astype(jnp.bfloat16),
                        preferred_element_type=jnp.float32)
                + b).reshape(BATCH, SEQ, NUM_CLASSES).astype(x.dtype)
    assert jnp.allclose(out, ref_bf16, atol=1e-5, rtol=1e-5)

    # Loose check against the pure-f32 math (bf16 cast introduces ~1e-2 rel err).
    ref_f32 = x @ w + b
    assert jnp.allclose(out, ref_f32, atol=3e-2, rtol=3e-2)

    print("KERNEL_OK")
</pallas_src>

<mosaic_0001>
module attributes {stable_mosaic.version = 11 : i64} {
  func.func @classifier_kernel(%arg0: i32, %arg1: memref<16x32xbf16, #tpu.memory_space<vmem>>, %arg2: memref<32x128xbf16, #tpu.memory_space<vmem>>, %arg3: memref<1x128xf32, #tpu.memory_space<vmem>>, %arg4: memref<16x128xf32, #tpu.memory_space<vmem>>) attributes {dimension_semantics = [#tpu.dimension_semantics<parallel>], iteration_bounds = array<i64: 1>, scalar_prefetch = 0 : i64, scratch_operands = 0 : i64, tpu.core_type = #tpu.core_type<tc>, window_params = [{transform_indices = @transform_0, window_bounds = array<i64: 16, 32>}, {pipeline_mode = #tpu.pipeline_mode<synchronous>, transform_indices = @transform_1, window_bounds = array<i64: 32, 128>}, {pipeline_mode = #tpu.pipeline_mode<synchronous>, transform_indices = @transform_2, window_bounds = array<i64: 1, 128>}, {transform_indices = @transform_3, window_bounds = array<i64: 16, 128>}]} {
    %c0 = arith.constant 0 : index
    %c0_0 = arith.constant 0 : index
    %0 = vector.load %arg1[%c0, %c0_0] : memref<16x32xbf16, #tpu.memory_space<vmem>>, vector<16x32xbf16>
    %c0_1 = arith.constant 0 : index
    %c0_2 = arith.constant 0 : index
    %1 = vector.load %arg2[%c0_1, %c0_2] : memref<32x128xbf16, #tpu.memory_space<vmem>>, vector<32x128xbf16>
    %cst = arith.constant dense<0.000000e+00> : vector<16x128xf32>
    %2 = tpu.matmul %0, %1, %cst {dimension_numbers = #tpu.dot_dimension_numbers<[1], [0], [0], [1], [0, 0, 1, 1], [], []>} : vector<16x32xbf16>, vector<32x128xbf16>, vector<16x128xf32> -> vector<16x128xf32>
    %c0_3 = arith.constant 0 : index
    %c0_4 = arith.constant 0 : index
    %3 = vector.load %arg3[%c0_3, %c0_4] : memref<1x128xf32, #tpu.memory_space<vmem>>, vector<1x128xf32>
    %4 = vector.broadcast %3 : vector<1x128xf32> to vector<16x128xf32>
    %5 = arith.addf %2, %4 : vector<16x128xf32>
    %c0_5 = arith.constant 0 : index
    %c0_6 = arith.constant 0 : index
    %6 = vector.load %arg4[%c0_5, %c0_6] : memref<16x128xf32, #tpu.memory_space<vmem>>, vector<16x128xf32>
    tpu.vector_store %arg4[%c0_5, %c0_6], %5 {strides = array<i32>} : memref<16x128xf32, #tpu.memory_space<vmem>>, vector<16x128xf32>,
    return
  }
  func.func @transform_0(%arg0: i32) -> (i32, i32) {
    %c0_i32 = arith.constant 0 : i32
    %c0_i32_0 = arith.constant 0 : i32
    return %arg0, %c0_i32 : i32, i32
  }
  func.func @transform_1(%arg0: i32) -> (i32, i32) {
    %c0_i32 = arith.constant 0 : i32
    %c0_i32_0 = arith.constant 0 : i32
    %c0_i32_1 = arith.constant 0 : i32
    return %c0_i32, %c0_i32_0 : i32, i32
  }
  func.func @transform_2(%arg0: i32) -> (i32, i32) {
    %c0_i32 = arith.constant 0 : i32
    %c0_i32_0 = arith.constant 0 : i32
    %c0_i32_1 = arith.constant 0 : i32
    return %c0_i32, %c0_i32_0 : i32, i32
  }
  func.func @transform_3(%arg0: i32) -> (i32, i32) {
    %c0_i32 = arith.constant 0 : i32
    %c0_i32_0 = arith.constant 0 : i32
    return %arg0, %c0_i32 : i32, i32
  }
}

</mosaic_0001>

<llo_original>
// kernel: tpu_custom_call.1
$region0: #{tpu_custom_call.1}
  #allocation0 [shape = 'u32[]', space=smem, size = 0x4, offset = 0x4, fixed_abs, tag = 'smem constant byte address 0x4 - core index']
  #allocation1 [shape = 'u32[72,128]{1,0:T(1,128)}', space=vmem, size = 0x9000, scoped, tag = 'internal scratch']
  %s0 = inlined_call_operand.hbm [shape: bf16[16,32], index: 0, kind: input, shape index: {}]
  %s1 = inlined_call_operand.hbm [shape: bf16[32,128], index: 1, kind: input, shape index: {}]
  %s2 = inlined_call_operand.vmem [shape: f32[1,128], index: 2, kind: input, shape index: {}]
  %s3 = inlined_call_operand.hbm [shape: f32[16,128], index: 3, kind: output, shape index: {}]
  %s4 = sld [smem:[#allocation0]]
  $region30: #{tpu_custom_call.1} parent=0
    _
  %s6 = ssub.s32 1, %s4
  %s7 = scalar_select 0, %s6, %s4
  $region1: #{tpu_custom_call.1} parent=0
    #allocation2 [shape = 'u8[4096]{0}', space=vmem, size = 0x1000, scoped, tag = 'input window, operand 0, single buffered']
    #allocation3 [shape = 's32[1]{0}', space=sflag, size = 0x4, scoped, tag = 'scoped memory for tpu_custom_call.1']
    #allocation4 [shape = 's32[1]{0}', space=sflag, size = 0x4, scoped, tag = 'scoped memory for tpu_custom_call.1']
    #allocation5 [shape = 'u8[8192]{0}', space=vmem, size = 0x2000, scoped, tag = 'input window, operand 1, single buffered']
    #allocation6 [shape = 's32[1]{0}', space=sflag, size = 0x4, scoped, tag = 'scoped memory for tpu_custom_call.1']
    #allocation7 [shape = 'u8[8192]{0}', space=vmem, size = 0x2000, scoped, tag = 'output window, operand 0, single buffered']
    %8 = vsyncpa [#allocation3], 0
    %9 = vsyncpa [#allocation6], 0
    %10 = vsyncpa [#allocation4], 0
    // Predicated region
    $region2: #{tpu_custom_call.1} parent=1 // pred_check
      _
    $region3: #{tpu_custom_call.1} parent=1 // pred_check_branch
      %12 = sbr.rel (0) target = $region5
    $region4: #{tpu_custom_call.1} parent=1 // pred_region
      %14 = vsyncadd [#allocation3], 0
      %s15 = sshll.u32 %s0, 4
      %s16 = int_to_ptr.hbm [resolvable:$true] %s15
      %s17 = sshll.u32 [#allocation2], 4
      %s18 = int_to_ptr.vmem [resolvable:$true] %s17
      %23 = dma.hbm_to_vmem [thread:$0]  %s16, 128, %s18, [#allocation3], 64, 64, 4
    $region5: #{tpu_custom_call.1} parent=1 // pred_fallthru
      _
    // Predicated region
    $region6: #{tpu_custom_call.1} parent=1 // pred_check
      _
    $region7: #{tpu_custom_call.1} parent=1 // pred_check_branch
      %25 = sbr.rel (0) target = $region9
    $region8: #{tpu_custom_call.1} parent=1 // pred_region
      %27 = vsyncadd [#allocation6], 0
      %s28 = sshll.u32 %s1, 4
      %s29 = int_to_ptr.hbm [resolvable:$true] %s28
      %s30 = sshll.u32 [#allocation5], 4
      %s31 = int_to_ptr.vmem [resolvable:$true] %s30
      %36 = dma.hbm_to_vmem [thread:$0]  %s29, 256, %s31, [#allocation6], 64, 64, 4
    $region9: #{tpu_custom_call.1} parent=1 // pred_fallthru
      _
    // Predicated region
    $region10: #{tpu_custom_call.1} parent=1 // pred_check
      _
    $region11: #{tpu_custom_call.1} parent=1 // pred_check_branch
      %38 = sbr.rel (0) target = $region13
    $region12: #{tpu_custom_call.1} parent=1 // pred_region
      _
    $region13: #{tpu_custom_call.1} parent=1 // pred_fallthru
      _
    // Predicated region
    $region14: #{tpu_custom_call.1} parent=1 // pred_check
      _
    $region15: #{tpu_custom_call.1} parent=1 // pred_check_branch
      %40 = sbr.rel (0) target = $region17
    $region16: #{tpu_custom_call.1} parent=1 // pred_region
      %42 = dma.done [#allocation3], 128
    $region17: #{tpu_custom_call.1} parent=1 // pred_fallthru
      _
    // Predicated region
    $region18: #{tpu_custom_call.1} parent=1 // pred_check
      _
    $region19: #{tpu_custom_call.1} parent=1 // pred_check_branch
      %44 = sbr.rel (0) target = $region21
    $region20: #{tpu_custom_call.1} parent=1 // pred_region
      %46 = dma.done [#allocation6], 256
    $region21: #{tpu_custom_call.1} parent=1 // pred_fallthru
      _
    %v48 = vld [vmem:[#allocation2] sm:$0xf]
    %v49 = vld [vmem:[#allocation2 + $0x4] sm:$0xf]
    %v50 = vld [vmem:[#allocation5] sm:$0xf]
    %v51 = vld [vmem:[#allocation5 + $0x4] sm:$0xf]
    %v52 = vld [vmem:[#allocation5 + $0x8] sm:$0xf]
    %v53 = vld [vmem:[#allocation5 + $0xc] sm:$0xf]
    %v54 = vld [vmem:[%s2] sm:$0x1]
    %v56 = vperm.slane %v54, 0
    %v60 = vunpack.c.l.b16 %v48
    %v61 = vunpack.c.l.b16 %v49
    %v62 = vpack.c.b16 %v61, %v60
    %v67 = vunpack.c.l.b16 %v50
    %v68 = vunpack.c.l.b16 %v51
    %v69 = vunpack.c.l.b16 %v52
    %v70 = vunpack.c.l.b16 %v53
    %v71 = vpack.c.b16 %v68, %v67
    %v72 = vpack.c.b16 %v70, %v69
    %vm75 = vcmask 261120
    %v77 = vsel %vm75, %v62, 0
    %79 = vmatpush.bf16.msra.mxu0 0
    %80 = vmatpush.bf16.msra.mxu0 0
    %81 = vmatpush.bf16.msra.mxu0 0
    %82 = vmatpush.bf16.msra.mxu0 0
    %83 = vmatpush.bf16.msra.mxu0 0
    %84 = vmatpush.bf16.msra.mxu0 0
    %85 = vmatpush.bf16.msra.mxu0 %v72
    %86 = vmatpush.bf16.msra.mxu0 %v71
    %87 = vmatmul.bf16.gmra.mxu0 %v77
    %v88 = vpop.f32.mrf.mxu0
    %v89 = vadd.f32 %v56, %v88
    %v90 = vpop.f32.mrf.mxu0
    %v91 = vadd.f32 %v56, %v90
    %92 = vdwg.mxu0
    %93 = vst [vmem:[#allocation7] sm:$0xff] %v89
    %94 = vst [vmem:[#allocation7 + $0x8] sm:$0xff] %v91
    // Predicated region
    $region22: #{tpu_custom_call.1} parent=1 // pred_check
      _
    $region23: #{tpu_custom_call.1} parent=1 // pred_check_branch
      %96 = sbr.rel (0) target = $region25
    $region24: #{tpu_custom_call.1} parent=1 // pred_region
      %98 = vsyncadd [#allocation4], 0
      %s99 = sshll.u32 [#allocation7], 4
      %s100 = int_to_ptr.vmem [resolvable:$true] %s99
      %s101 = sshll.u32 %s3, 4
      %s102 = int_to_ptr.hbm [resolvable:$true] %s101
      %107 = dma.vmem_to_hbm [thread:$0]  %s100, 256, %s102, [#allocation4], 128, 128, 8
    $region25: #{tpu_custom_call.1} parent=1 // pred_fallthru
      _
    // Predicated region
    $region26: #{tpu_custom_call.1} parent=1 // pred_check
      _
    $region27: #{tpu_custom_call.1} parent=1 // pred_check_branch
      %109 = sbr.rel (0) target = $region29
    $region28: #{tpu_custom_call.1} parent=1 // pred_region
      %111 = dma.done [#allocation4], 256
    $region29: #{tpu_custom_call.1} parent=1 // pred_fallthru
      _
    %112 = vsyncpa [#allocation3], 1
    %113 = vsyncpa [#allocation6], 1
    %114 = vsyncpa [#allocation4], 1

</llo_original>
